<compile_context>
chip_gen: v7x
topology: tpu7x:2x2x1
jax: 0.10.0
libtpu: 0.0.40
codegen_flags: <defaults>
</compile_context>

<pallas_src>
import jax
import jax.numpy as jnp
from jax.experimental import pallas as pl
from jax.experimental.pallas import tpu as pltpu


def to_rgb_kernel(modw_ref, x_ref, prev_ref, o_ref):
    # One grid step == one (batch element, spatial tile).
    modw = modw_ref[0]                                  # (out_ch, C)
    x = x_ref[0]                                        # (C, TILE_HW)
    y = jnp.dot(modw, x, preferred_element_type=jnp.float32)   # (out_ch, TILE_HW) f32
    o_ref[0] = (y + prev_ref[0].astype(jnp.float32)).astype(o_ref.dtype)


def _choose_tile_hw(hw, c, out_ch, itemsize, vmem_budget_bytes=8 << 20):
    """Pick a lane-dense spatial tile: multiple of 128, sized against a
    conservative VMEM budget (double-buffered x + prev + out), capped at 32K."""
    per_lane_bytes = 2 * (c + 2 * out_ch) * itemsize    # 2x = double buffering
    max_tile = max(128, (vmem_budget_bytes // per_lane_bytes) // 128 * 128)
    max_tile = min(max_tile, 32768)
    if hw <= max_tile:
        return hw                                        # full-dim block is always legal
    # Largest multiple of 128 <= max_tile that divides hw (128 tried last as fallback).
    best = 128
    t = 128
    while t <= max_tile:
        if hw % t == 0:
            best = t
        t += 128
    return best


def to_rgb(x, prev, s, A_w, A_b, w):
    """x: (B, C, H, W) NCHW; prev: (B, out_ch, H, W); s: (B, lat_dim).
    A_w: (C, lat_dim), A_b: (C,), w: (out_ch, C)  (the 1x1 conv weight squeezed)."""
    B, C, H, W = x.shape
    out_ch = w.shape[0]
    HW = H * W
    out_dtype = x.dtype

    # --- style Linear + modulation hoisted out of the kernel (tiny compute) ---
    style = jnp.dot(s.astype(jnp.float32), A_w.astype(jnp.float32).T) \
        + A_b.astype(jnp.float32)                                        # (B, C)
    modw = (w.astype(jnp.float32)[None, :, :]
            * (style[:, None, :] + 1.0)).astype(out_dtype)               # (B, out_ch, C)

    # --- flatten spatial onto the lane axis, keep native dtype ---
    x_f = x.reshape(B, C, HW)
    prev_f = prev.reshape(B, out_ch, HW).astype(out_dtype)

    tile_hw = _choose_tile_hw(HW, C, out_ch, jnp.dtype(out_dtype).itemsize)
    n_hw = pl.cdiv(HW, tile_hw)
    hw_pad = n_hw * tile_hw
    if hw_pad != HW:
        pad = hw_pad - HW
        x_f = jnp.pad(x_f, ((0, 0), (0, 0), (0, pad)))
        prev_f = jnp.pad(prev_f, ((0, 0), (0, 0), (0, pad)))

    out = pl.pallas_call(
        to_rgb_kernel,
        out_shape=jax.ShapeDtypeStruct((B, out_ch, hw_pad), out_dtype),
        grid_spec=pltpu.PrefetchScalarGridSpec(
            num_scalar_prefetch=0,
            # HW innermost: modw block index only changes on batch boundaries,
            # so it stays resident in VMEM across all spatial tiles of a batch.
            grid=(B, n_hw),
            in_specs=[
                pl.BlockSpec((1, out_ch, C), lambda i, h: (i, 0, 0)),        # modw
                pl.BlockSpec((1, C, tile_hw), lambda i, h: (i, 0, h)),       # x
                pl.BlockSpec((1, out_ch, tile_hw), lambda i, h: (i, 0, h)),  # prev
            ],
            out_specs=pl.BlockSpec((1, out_ch, tile_hw), lambda i, h: (i, 0, h)),
        ),
        compiler_params=pltpu.CompilerParams(
            dimension_semantics=("parallel", "parallel")),
    )(modw, x_f, prev_f)

    if hw_pad != HW:
        out = out[:, :, :HW]
    return out.reshape(B, out_ch, H, W)


if __name__ == "__main__":
    # Small shapes consistent with the module: batch=2, in_dim=16, spatial 16x16,
    # latent dim=32, RGB channels=3.
    B, C, H, W = 2, 16, 16, 16
    lat_dim, out_ch = 32, 3

    key = jax.random.PRNGKey(0)
    kx, kp, ks, kaw, kab, kw = jax.random.split(key, 6)

    x = jax.random.normal(kx, (B, C, H, W), dtype=jnp.float32)
    prev = jax.random.normal(kp, (B, out_ch, H, W), dtype=jnp.float32)
    s = jax.random.normal(ks, (B, lat_dim), dtype=jnp.float32)

    # nn.Linear(lat_dim, in_dim): weight (in_dim, lat_dim), bias (in_dim,)
    A_w = jax.random.normal(kaw, (C, lat_dim), dtype=jnp.float32) * (1.0 / jnp.sqrt(lat_dim))
    A_b = jax.random.normal(kab, (C,), dtype=jnp.float32) * 0.01
    # DemodConv weight (out_dim, in_dim, 1, 1), kaiming_normal fan_in
    w4 = jax.random.normal(kw, (out_ch, C, 1, 1), dtype=jnp.float32) * jnp.sqrt(2.0 / C)
    w = w4.reshape(out_ch, C)

    out = to_rgb(x, prev, s, A_w, A_b, w)
    out = jax.block_until_ready(out)

    # Pure-JAX reference check of the same math.
    style = s @ A_w.T + A_b                                  # (B, C)
    modw = w[None, :, :] * (style[:, None, :] + 1.0)         # (B, out_ch, C)
    ref = jnp.einsum('boc,bchw->bohw', modw, x) + prev
    assert jnp.allclose(out, ref, atol=1e-4, rtol=1e-4), "mismatch vs reference"

    print("KERNEL_OK")
</pallas_src>

<mosaic_0001>
module attributes {stable_mosaic.version = 11 : i64} {
  func.func @to_rgb_kernel(%arg0: i32, %arg1: i32, %arg2: memref<1x3x16xf32, #tpu.memory_space<vmem>>, %arg3: memref<1x16x256xf32, #tpu.memory_space<vmem>>, %arg4: memref<1x3x256xf32, #tpu.memory_space<vmem>>, %arg5: memref<1x3x256xf32, #tpu.memory_space<vmem>>) attributes {dimension_semantics = [#tpu.dimension_semantics<parallel>, #tpu.dimension_semantics<parallel>], iteration_bounds = array<i64: 2, 1>, scalar_prefetch = 0 : i64, scratch_operands = 0 : i64, tpu.core_type = #tpu.core_type<tc>, window_params = [{transform_indices = @transform_0, window_bounds = array<i64: 1, 3, 16>}, {transform_indices = @transform_1, window_bounds = array<i64: 1, 16, 256>}, {transform_indices = @transform_2, window_bounds = array<i64: 1, 3, 256>}, {transform_indices = @transform_3, window_bounds = array<i64: 1, 3, 256>}]} {
    %c0 = arith.constant 0 : index
    %c0_0 = arith.constant 0 : index
    %c0_1 = arith.constant 0 : index
    %0 = vector.load %arg2[%c0, %c0_0, %c0_1] : memref<1x3x16xf32, #tpu.memory_space<vmem>>, vector<1x3x16xf32>
    %1 = vector.shape_cast %0 : vector<1x3x16xf32> to vector<3x16xf32>
    %c0_2 = arith.constant 0 : index
    %c0_3 = arith.constant 0 : index
    %c0_4 = arith.constant 0 : index
    %2 = vector.load %arg3[%c0_2, %c0_3, %c0_4] : memref<1x16x256xf32, #tpu.memory_space<vmem>>, vector<1x16x256xf32>
    %3 = vector.shape_cast %2 : vector<1x16x256xf32> to vector<16x256xf32>
    %cst = arith.constant dense<0.000000e+00> : vector<3x256xf32>
    %4 = tpu.matmul %1, %3, %cst {dimension_numbers = #tpu.dot_dimension_numbers<[1], [0], [0], [1], [0, 0, 1, 1], [], []>} : vector<3x16xf32>, vector<16x256xf32>, vector<3x256xf32> -> vector<3x256xf32>
    %c0_5 = arith.constant 0 : index
    %c0_6 = arith.constant 0 : index
    %c0_7 = arith.constant 0 : index
    %5 = vector.load %arg4[%c0_5, %c0_6, %c0_7] : memref<1x3x256xf32, #tpu.memory_space<vmem>>, vector<1x3x256xf32>
    %6 = vector.shape_cast %5 : vector<1x3x256xf32> to vector<3x256xf32>
    %7 = arith.addf %4, %6 : vector<3x256xf32>
    %c0_8 = arith.constant 0 : index
    %c0_9 = arith.constant 0 : index
    %c0_10 = arith.constant 0 : index
    %8 = vector.load %arg5[%c0_8, %c0_9, %c0_10] : memref<1x3x256xf32, #tpu.memory_space<vmem>>, vector<1x3x256xf32>
    %9 = vector.shape_cast %8 : vector<1x3x256xf32> to vector<3x256xf32>
    %10 = vector.shape_cast %7 : vector<3x256xf32> to vector<1x3x256xf32>
    tpu.vector_store %arg5[%c0_8, %c0_9, %c0_10], %10 {strides = array<i32>} : memref<1x3x256xf32, #tpu.memory_space<vmem>>, vector<1x3x256xf32>,
    return
  }
  func.func @transform_0(%arg0: i32, %arg1: i32) -> (i32, i32, i32) {
    %c0_i32 = arith.constant 0 : i32
    %c0_i32_0 = arith.constant 0 : i32
    %c0_i32_1 = arith.constant 0 : i32
    return %arg0, %c0_i32, %c0_i32_0 : i32, i32, i32
  }
  func.func @transform_1(%arg0: i32, %arg1: i32) -> (i32, i32, i32) {
    %c0_i32 = arith.constant 0 : i32
    %c0_i32_0 = arith.constant 0 : i32
    return %arg0, %c0_i32, %arg1 : i32, i32, i32
  }
  func.func @transform_2(%arg0: i32, %arg1: i32) -> (i32, i32, i32) {
    %c0_i32 = arith.constant 0 : i32
    %c0_i32_0 = arith.constant 0 : i32
    return %arg0, %c0_i32, %arg1 : i32, i32, i32
  }
  func.func @transform_3(%arg0: i32, %arg1: i32) -> (i32, i32, i32) {
    %c0_i32 = arith.constant 0 : i32
    %c0_i32_0 = arith.constant 0 : i32
    return %arg0, %c0_i32, %arg1 : i32, i32, i32
  }
}

</mosaic_0001>

<llo_original>
// kernel: tpu_custom_call.1
$region0: #{tpu_custom_call.1}
  #allocation0 [shape = 'u32[]', space=smem, size = 0x4, offset = 0x4, fixed_abs, tag = 'smem constant byte address 0x4 - core index']
  #allocation1 [shape = 'u32[144,128]{1,0:T(1,128)}', space=vmem, size = 0x12000, scoped, tag = 'internal scratch']
  %s0 = inlined_call_operand.vmem [shape: f32[2,3,16], index: 0, kind: input, shape index: {}]
  %s1 = inlined_call_operand.hbm [shape: f32[2,16,256], index: 1, kind: input, shape index: {}]
  %s2 = inlined_call_operand.vmem [shape: f32[2,3,256], index: 2, kind: input, shape index: {}]
  %s3 = inlined_call_operand.vmem [shape: f32[2,3,256], index: 3, kind: output, shape index: {}]
  %s4 = sld [smem:[#allocation0]]
  $region49: #{tpu_custom_call.1} parent=0
    _
  %s6 = ssub.s32 1, %s4
  %s7 = scalar_select 0, %s6, %s4
  $region1: #{tpu_custom_call.1} parent=0
    #allocation2 [shape = 'u8[32768]{0}', space=vmem, size = 0x8000, scoped, tag = 'input window, operand 1']
    #allocation3 [shape = 's32[2]{0}', space=sflag, size = 0x8, scoped, tag = 'scoped memory for tpu_custom_call.1']
    %8 = vsyncpa [#allocation3], 0
    %s9 = scalar_lea.sflag [#allocation3], 1
    %10 = vsyncpa %s9, 0
    loop: start=0, step=1, limit=4
    $region2: #{tpu_custom_call.1} parent=1 // loop_pre_header
      _
    $region3: #{tpu_custom_call.1} parent=1 // loop_header
      %s12 = sphi 0, %s16
      %p13 = scmp.ge.s32.totalorder %s12, 4
      %s19 = sphi 0, %s31
      %s20 = sphi 0, %s27
      %s21 = sphi 0, %s19
      %s22 = sphi 0, %s20
      %s23 = sphi 0, %s21
      %s24 = sphi 0, %s22
      %s34 = sphi 0, %s36
      %s37 = sphi 0, %s34
      %s38 = sphi 0, %s37
      %s54 = sphi 0, %s38
      %s62 = sphi 0, %s64
      %s65 = sphi 0, %s62
      %s66 = sphi 0, %s65
      %s82 = sphi 0, %s66
      %s90 = sphi 0, %s92
      %s93 = sphi 0, %s90
      %s94 = sphi 0, %s93
      %s110 = sphi 0, %s94
      %s118 = sphi 0, %s120
      %s121 = sphi 0, %s118
      %s122 = sphi 0, %s121
      %s138 = sphi 0, %s122
    $region4: #{tpu_custom_call.1} parent=1 // loop_header_branch
      %15 = sbr.rel (%p13) target = $region8
    $region5: #{tpu_custom_call.1} parent=1 // loop_body
      %s17 = ssub.s32 %s12, 1
      %s18 = ssub.s32 %s12, 2
      %s25 = sadd.s32 1, %s20
      %p26 = scmp.ge.s32.totalorder %s25, 1
      %s27 = scalar_select %p26, 0, %s25
      %s28 = sadd.s32 1, %s19
      %s29 = scalar_select %p26, %s28, %s19
      %p30 = scmp.ge.s32.totalorder %s29, 2
      %s31 = scalar_select %p30, 0, %s29
      %s32 = ssub.s32 %s19, %s31
      %p33 = scmp.eq.s32.totalorder %s32, 0
      %s35 = sadd.s32 %s34, 1
      %s36 = scalar_select %p33, %s34, %s35
      %p39 = pneg %p33
      %p40 = scmp.eq.s32.totalorder %s12, 1
      %p41 = por %p39, %p40
      %p42 = scmp.ne.s32.totalorder %s34, %s37
      %p43 = scmp.eq.s32.totalorder %s12, 0
      %p44 = por %p42, %p43
      %p45 = scmp.ne.s32.totalorder %s34, %s37
      %p46 = scmp.eq.s32.totalorder %s17, 1
      %p47 = por %p45, %p46
      %p48 = scmp.ne.s32.totalorder %s37, %s38
      %p49 = scmp.eq.s32.totalorder %s17, 0
      %p50 = por %p48, %p49
      %p51 = scmp.ne.s32.totalorder %s37, %s38
      %p52 = scmp.eq.s32.totalorder %s18, 1
      %p53 = por %p51, %p52
      %p55 = scmp.ne.s32.totalorder %s38, %s54
      %p56 = scmp.eq.s32.totalorder %s18, 0
      %p57 = por %p55, %p56
      %s58 = ssub.s32 %s19, %s31
      %s59 = ssub.s32 %s20, %s27
      %s60 = sor.u32 %s58, %s59
      %p61 = scmp.eq.s32.totalorder %s60, 0
      %s63 = sadd.s32 %s62, 1
      %s64 = scalar_select %p61, %s62, %s63
      %p67 = pneg %p61
      %p68 = scmp.eq.s32.totalorder %s12, 1
      %p69 = por %p67, %p68
      %p70 = scmp.ne.s32.totalorder %s62, %s65
      %p71 = scmp.eq.s32.totalorder %s12, 0
      %p72 = por %p70, %p71
      %p73 = scmp.ne.s32.totalorder %s62, %s65
      %p74 = scmp.eq.s32.totalorder %s17, 1
      %p75 = por %p73, %p74
      %p76 = scmp.ne.s32.totalorder %s65, %s66
      %p77 = scmp.eq.s32.totalorder %s17, 0
      %p78 = por %p76, %p77
      %p79 = scmp.ne.s32.totalorder %s65, %s66
      %p80 = scmp.eq.s32.totalorder %s18, 1
      %p81 = por %p79, %p80
      %p83 = scmp.ne.s32.totalorder %s66, %s82
      %p84 = scmp.eq.s32.totalorder %s18, 0
      %p85 = por %p83, %p84
      %s86 = ssub.s32 %s19, %s31
      %s87 = ssub.s32 %s20, %s27
      %s88 = sor.u32 %s86, %s87
      %p89 = scmp.eq.s32.totalorder %s88, 0
      %s91 = sadd.s32 %s90, 1
      %s92 = scalar_select %p89, %s90, %s91
      %p95 = pneg %p89
      %p96 = scmp.eq.s32.totalorder %s12, 1
      %p97 = por %p95, %p96
      %p98 = scmp.ne.s32.totalorder %s90, %s93
      %p99 = scmp.eq.s32.totalorder %s12, 0
      %p100 = por %p98, %p99
      %p101 = scmp.ne.s32.totalorder %s90, %s93
      %p102 = scmp.eq.s32.totalorder %s17, 1
      %p103 = por %p101, %p102
      %p104 = scmp.ne.s32.totalorder %s93, %s94
      %p105 = scmp.eq.s32.totalorder %s17, 0
      %p106 = por %p104, %p105
      %p107 = scmp.ne.s32.totalorder %s93, %s94
      %p108 = scmp.eq.s32.totalorder %s18, 1
      %p109 = por %p107, %p108
      %p111 = scmp.ne.s32.totalorder %s94, %s110
      %p112 = scmp.eq.s32.totalorder %s18, 0
      %p113 = por %p111, %p112
      %s114 = ssub.s32 %s19, %s31
      %s115 = ssub.s32 %s20, %s27
      %s116 = sor.u32 %s114, %s115
      %p117 = scmp.eq.s32.totalorder %s116, 0
      %s119 = sadd.s32 %s118, 1
      %s120 = scalar_select %p117, %s118, %s119
      %p123 = pneg %p117
      %p124 = scmp.eq.s32.totalorder %s12, 1
      %p125 = por %p123, %p124
      %p126 = scmp.ne.s32.totalorder %s118, %s121
      %p127 = scmp.eq.s32.totalorder %s12, 0
      %p128 = por %p126, %p127
      %p129 = scmp.ne.s32.totalorder %s118, %s121
      %p130 = scmp.eq.s32.totalorder %s17, 1
      %p131 = por %p129, %p130
      %p132 = scmp.ne.s32.totalorder %s121, %s122
      %p133 = scmp.eq.s32.totalorder %s17, 0
      %p134 = por %p132, %p133
      %p135 = scmp.ne.s32.totalorder %s121, %s122
      %p136 = scmp.eq.s32.totalorder %s18, 1
      %p137 = por %p135, %p136
      %p139 = scmp.ne.s32.totalorder %s122, %s138
      %p140 = scmp.eq.s32.totalorder %s18, 0
      %p141 = por %p139, %p140
      %p142 = scmp.le.s32.totalorder 1, %s12
      %p143 = scmp.lt.s32.totalorder %s12, 3
      %p144 = pnand %p142, %p143
      %p145 = pneg %p144
      // Predicated region
      $region9: #{tpu_custom_call.1} parent=5 // pred_check
        _
      $region10: #{tpu_custom_call.1} parent=5 // pred_check_branch
        %147 = sbr.rel (%p144) target = $region12
      $region11: #{tpu_custom_call.1} parent=5 // pred_region
        %s148 = ssub.s32 %s12, 1
      $region12: #{tpu_custom_call.1} parent=5 // pred_fallthru
        _
      %p149 = scmp.lt.s32.totalorder %s12, 2
      // Predicated region
      $region13: #{tpu_custom_call.1} parent=5 // pred_check
        %p150 = pneg %p149
      $region14: #{tpu_custom_call.1} parent=5 // pred_check_branch
        %152 = sbr.rel (%p150) target = $region16
      $region15: #{tpu_custom_call.1} parent=5 // pred_region
        // Predicated region
        $region17: #{tpu_custom_call.1} parent=15 // pred_check
          %p153 = pneg %p44
        $region18: #{tpu_custom_call.1} parent=15 // pred_check_branch
          %155 = sbr.rel (%p153) target = $region20
        $region19: #{tpu_custom_call.1} parent=15 // pred_region
          %p156 = scmp.lt.s32.totalorder %s19, 1
          %s157 = scalar_select %p156, %s19, 1
          %s158 = smul.addr %s157, 4
          %s159 = scalar_lea.vmem %s0, %s158
        $region20: #{tpu_custom_call.1} parent=15 // pred_fallthru
          _
        // Predicated region
        $region21: #{tpu_custom_call.1} parent=15 // pred_check
          %p160 = pneg %p72
        $region22: #{tpu_custom_call.1} parent=15 // pred_check_branch
          %162 = sbr.rel (%p160) target = $region24
        $region23: #{tpu_custom_call.1} parent=15 // pred_region
          %s163 = sand.u32 %s62, 1
          %s164 = scalar_lea.sflag [#allocation3], %s163
          %s165 = sand.u32 %s62, 1
          %s166 = smul.addr %s165, 32
          %s167 = scalar_lea.vmem [#allocation2], %s166
          %s168 = smul.u32 2, %s20
          %s170 = ssub.s32 512, 512
          %171 = vsyncadd %s164, %s170
          %s172 = smul.addr %s19, 4
          %s173 = sadd.s32 %s168, %s172
          %s174 = smul.addr %s173, 128
          %s175 = scalar_lea.hbm %s1, %s174
          %s176 = sshll.u32 %s167, 4
          %s177 = int_to_ptr.vmem [resolvable:$true] %s176
          %182 = dma.hbm_to_vmem [thread:$0]  %s175, 512, %s177, %s164, 256, 256, 16
        $region24: #{tpu_custom_call.1} parent=15 // pred_fallthru
          _
        // Predicated region
        $region25: #{tpu_custom_call.1} parent=15 // pred_check
          %p183 = pneg %p100
        $region26: #{tpu_custom_call.1} parent=15 // pred_check_branch
          %185 = sbr.rel (%p183) target = $region28
        $region27: #{tpu_custom_call.1} parent=15 // pred_region
          %s186 = smul.u32 2, %s20
          %p187 = scmp.lt.s32.totalorder %s19, 1
          %s188 = scalar_select %p187, %s19, 1
          %p189 = scmp.lt.s32.totalorder %s186, 1
          %s190 = scalar_select %p189, %s186, 1
          %s191 = smul.addr %s188, 2
          %s192 = sadd.s32 %s190, %s191
          %s193 = smul.addr %s192, 4
          %s194 = scalar_lea.vmem %s2, %s193
          %s195 = smul.u32 2, %s20
        $region28: #{tpu_custom_call.1} parent=15 // pred_fallthru
          _
      $region16: #{tpu_custom_call.1} parent=5 // pred_fallthru
        _
      %p196 = scmp.le.s32.totalorder 1, %s12
      %p197 = scmp.lt.s32.totalorder %s12, 3
      %p198 = pnand %p196, %p197
      %p199 = pneg %p198
      // Predicated region
      $region29: #{tpu_custom_call.1} parent=5 // pred_check
        _
      $region30: #{tpu_custom_call.1} parent=5 // pred_check_branch
        %201 = sbr.rel (%p198) target = $region32
      $region31: #{tpu_custom_call.1} parent=5 // pred_region
        %s202 = ssub.s32 %s12, 1
        %s203 = sand.u32 %s65, 1
        %s204 = scalar_lea.sflag [#allocation3], %s203
        %s205 = sand.u32 %s65, 1
        %s206 = smul.addr %s205, 32
        %s207 = scalar_lea.vmem [#allocation2], %s206
        // Predicated region
        $region33: #{tpu_custom_call.1} parent=31 // pred_check
          %p208 = pneg %p78
        $region34: #{tpu_custom_call.1} parent=31 // pred_check_branch
          %210 = sbr.rel (%p208) target = $region36
        $region35: #{tpu_custom_call.1} parent=31 // pred_region
          %211 = dma.done %s204, 512
        $region36: #{tpu_custom_call.1} parent=31 // pred_fallthru
          _
        %p212 = scmp.lt.s32.totalorder %s21, 1
        %s213 = scalar_select %p212, %s21, 1
        %s214 = smul.addr %s213, 4
        %s215 = scalar_lea.vmem %s0, %s214
        %p216 = pneg %p50
        %p217 = pneg %p47
        %s218 = sand.u32 %s65, 1
        %s219 = scalar_lea.sflag [#allocation3], %s218
        %s220 = sand.u32 %s65, 1
        %s221 = smul.addr %s220, 32
        %s222 = scalar_lea.vmem [#allocation2], %s221
        %p223 = pneg %p78
        %p224 = pneg %p75
        %s225 = smul.u32 2, %s22
        %p226 = scmp.lt.s32.totalorder %s21, 1
        %s227 = scalar_select %p226, %s21, 1
        %p228 = scmp.lt.s32.totalorder %s225, 1
        %s229 = scalar_select %p228, %s225, 1
        %s230 = smul.addr %s227, 2
        %s231 = sadd.s32 %s229, %s230
        %s232 = smul.addr %s231, 4
        %s233 = scalar_lea.vmem %s2, %s232
        %p234 = pneg %p106
        %p235 = pneg %p103
        %p236 = pneg %p134
        %p237 = pneg %p131
        %s238 = smul.u32 2, %s22
        %p239 = scmp.lt.s32.totalorder %s21, 1
        %s240 = scalar_select %p239, %s21, 1
        %p241 = scmp.lt.s32.totalorder %s238, 1
        %s242 = scalar_select %p241, %s238, 1
        %s243 = smul.addr %s240, 2
        %s244 = sadd.s32 %s242, %s243
        %s245 = smul.addr %s244, 4
        %s246 = scalar_lea.vmem %s3, %s245
        %p247 = scmp.lt.s32.totalorder %s21, 1
        %s248 = scalar_select %p247, %s21, 1
        %s249 = smul.addr %s248, 4
        %s250 = scalar_lea.vmem %s0, %s249
        %s251 = smul.u32 2, %s22
        %s252 = smul.u32 2, %s22
        %p253 = scmp.lt.s32.totalorder %s21, 1
        %s254 = scalar_select %p253, %s21, 1
        %p255 = scmp.lt.s32.totalorder %s252, 1
        %s256 = scalar_select %p255, %s252, 1
        %s257 = smul.addr %s254, 2
        %s258 = sadd.s32 %s256, %s257
        %s259 = smul.addr %s258, 4
        %s260 = scalar_lea.vmem %s2, %s259
        %s261 = smul.u32 2, %s22
        %s262 = smul.u32 2, %s22
        %p263 = scmp.lt.s32.totalorder %s21, 1
        %s264 = scalar_select %p263, %s21, 1
        %p265 = scmp.lt.s32.totalorder %s262, 1
        %s266 = scalar_select %p265, %s262, 1
        %s267 = smul.addr %s264, 2
        %s268 = sadd.s32 %s266, %s267
        %s269 = smul.addr %s268, 4
        %s270 = scalar_lea.vmem %s3, %s269
        %s271 = smul.u32 2, %s22
        %v272 = vld [vmem:[%s250] sm:$0x7]
        %v273 = vld [vmem:[%s207] sm:$0xff]
        %v274 = vld [vmem:[%s207 + $0x8] sm:$0xff]
        %v275 = vld [vmem:[%s207 + $0x10] sm:$0xff]
        %v276 = vld [vmem:[%s207 + $0x18] sm:$0xff]
        %v277 = vld [vmem:[%s260] sm:$0x77]
        %v279 = vcombine.high %v277, %v277
        %vm281 = vcmask 130048
        %v283 = vsel %vm281, %v272, 0
        %285 = vmatprep.subr.mxu0 %v274
        %286 = vmatpush1.msra.mxu0 %v273
        %287 = vmatprep.subr.mxu0 %v276
        %288 = vmatpush1.msra.mxu0 %v275
        %289 = vmatprep.subr.mxu0 0.0
        %290 = vmatpush1.msra.mxu0 0.0
        %291 = vmatprep.subr.mxu0 0.0
        %292 = vmatpush1.msra.mxu0 0.0
        %293 = vmatprep.subr.mxu0 0.0
        %294 = vmatpush1.msra.mxu0 0.0
        %295 = vmatprep.subr.mxu0 0.0
        %296 = vmatpush1.msra.mxu0 0.0
        %297 = vmatprep.subr.mxu0 0.0
        %298 = vmatpush1.msra.mxu0 0.0
        %299 = vmatprep.subr.mxu0 0.0
        %300 = vmatpush1.msra.mxu0 0.0
        %301 = vmatprep.subr.mxu0 0.0
        %302 = vmatpush1.msra.mxu0 0.0
        %303 = vmatprep.subr.mxu0 0.0
        %304 = vmatpush1.msra.mxu0 0.0
        %305 = vmatprep.subr.mxu0 0.0
        %306 = vmatpush1.msra.mxu0 0.0
        %307 = vmatprep.subr.mxu0 0.0
        %308 = vmatpush1.msra.mxu0 0.0
        %309 = vmatprep.subr.mxu0 0.0
        %310 = vmatpush1.msra.mxu0 0.0
        %311 = vmatprep.subr.mxu0 0.0
        %312 = vmatpush1.msra.mxu0 0.0
        %313 = vmatprep.subr.mxu0 0.0
        %314 = vmatpush1.msra.mxu0 0.0
        %315 = vmatprep.subr.mxu0 0.0
        %316 = vmatpush1.msra.mxu0 0.0
        %317 = vmatprep.subr.mxu0 0.0
        %318 = vmatpush1.msra.mxu0 0.0
        %319 = vmatprep.subr.mxu0 0.0
        %320 = vmatpush1.msra.mxu0 0.0
        %321 = vmatprep.subr.mxu0 0.0
        %322 = vmatpush1.msra.mxu0 0.0
        %323 = vmatprep.subr.mxu0 0.0
        %324 = vmatpush1.msra.mxu0 0.0
        %325 = vmatprep.subr.mxu0 0.0
        %326 = vmatpush1.msra.mxu0 0.0
        %327 = vmatprep.subr.mxu0 0.0
        %328 = vmatpush1.msra.mxu0 0.0
        %329 = vmatprep.subr.mxu0 0.0
        %330 = vmatpush1.msra.mxu0 0.0
        %331 = vmatprep.subr.mxu0 0.0
        %332 = vmatpush1.msra.mxu0 0.0
        %333 = vmatprep.subr.mxu0 0.0
        %334 = vmatpush1.msra.mxu0 0.0
        %335 = vmatprep.subr.mxu0 0.0
        %336 = vmatpush1.msra.mxu0 0.0
        %337 = vmatprep.subr.mxu0 0.0
        %338 = vmatpush1.msra.mxu0 0.0
        %339 = vmatprep.subr.mxu0 0.0
        %340 = vmatpush1.msra.mxu0 0.0
        %341 = vmatprep.subr.mxu0 0.0
        %342 = vmatpush1.msra.mxu0 0.0
        %343 = vmatprep.subr.mxu0 0.0
        %344 = vmatpush1.msra.mxu0 0.0
        %345 = vmatprep.subr.mxu0 0.0
        %346 = vmatpush1.msra.mxu0 0.0
        %347 = vmatprep.subr.mxu0 0.0
        %348 = vmatpush1.msra.mxu0 0.0
        %349 = vmatprep.mubr.f32.mxu0 0.0
        %350 = vmatmul.mubr.f32.gmra.mrb[0].mxu0 %v283
        %v351 = vpop.f32.mrb[0].mxu0
        %v352 = vadd.f32 %v277, %v351
        %v353 = vpop.f32.mrb[0].mxu0
        %v354 = vadd.f32 %v279, %v353
        %355 = vdwg.mxu0
        %v358 = vcombine.low %v352, %v354
        %360 = vst [vmem:[%s270] sm:$0x77] %v358
        %s361 = smul.u32 2, %s22
        %p362 = scmp.lt.s32.totalorder %s21, 1
        %s363 = scalar_select %p362, %s21, 1
        %p364 = scmp.lt.s32.totalorder %s361, 1
        %s365 = scalar_select %p364, %s361, 1
        %s366 = smul.addr %s363, 2
        %s367 = sadd.s32 %s365, %s366
        %s368 = smul.addr %s367, 4
        %s369 = scalar_lea.vmem %s3, %s368
        // Predicated region
        $region37: #{tpu_custom_call.1} parent=31 // pred_check
          %p370 = pneg %p131
        $region38: #{tpu_custom_call.1} parent=31 // pred_check_branch
          %372 = sbr.rel (%p370) target = $region40
        $region39: #{tpu_custom_call.1} parent=31 // pred_region
          %s373 = smul.u32 2, %s22
        $region40: #{tpu_custom_call.1} parent=31 // pred_fallthru
          _
      $region32: #{tpu_custom_call.1} parent=5 // pred_fallthru
        _
      %p374 = scmp.le.s32.totalorder 2, %s12
      // Predicated region
      $region41: #{tpu_custom_call.1} parent=5 // pred_check
        %p375 = pneg %p374
      $region42: #{tpu_custom_call.1} parent=5 // pred_check_branch
        %377 = sbr.rel (%p375) target = $region44
      $region43: #{tpu_custom_call.1} parent=5 // pred_region
        %s378 = ssub.s32 %s12, 2
        // Predicated region
        $region45: #{tpu_custom_call.1} parent=43 // pred_check
          %p379 = pneg %p137
        $region46: #{tpu_custom_call.1} parent=43 // pred_check_branch
          %381 = sbr.rel (%p379) target = $region48
        $region47: #{tpu_custom_call.1} parent=43 // pred_region
          %s382 = smul.u32 2, %s24
          %p383 = scmp.lt.s32.totalorder %s23, 1
          %s384 = scalar_select %p383, %s23, 1
          %p385 = scmp.lt.s32.totalorder %s382, 1
          %s386 = scalar_select %p385, %s382, 1
          %s387 = smul.addr %s384, 2
          %s388 = sadd.s32 %s386, %s387
          %s389 = smul.addr %s388, 4
          %s390 = scalar_lea.vmem %s3, %s389
        $region48: #{tpu_custom_call.1} parent=43 // pred_fallthru
          _
      $region44: #{tpu_custom_call.1} parent=5 // pred_fallthru
        _
    $region6: #{tpu_custom_call.1} parent=1 // loop_footer
      %s16 = sadd.s32 1, %s12
    $region7: #{tpu_custom_call.1} parent=1 // loop_footer_branch
      %11 = sbr.rel target = $region3
    $region8: #{tpu_custom_call.1} parent=1 // loop_exit
      _
    %391 = vsyncpa [#allocation3], 1
    %s392 = scalar_lea.sflag [#allocation3], 1
    %393 = vsyncpa %s392, 1

</llo_original>
